<compile_context>
chip_gen: v6e
topology: v6e:2x2x1
jax: 0.10.0
libtpu: 0.0.40
codegen_flags: <defaults>
</compile_context>

<pallas_src>
import functools

import jax
import jax.numpy as jnp
from jax.experimental import pallas as pl
from jax.experimental.pallas import tpu as pltpu


# ----------------------------------------------------------------------------
# Kernels
# ----------------------------------------------------------------------------
def _lane_mask_kernel(p: int):
    """Lane-dense kernel; valid when C % p == 0 and lane_width % p == 0, so the
    exchange mask reduces to (lane % p == 0) independent of the block offset."""
    is_pow2 = (p & (p - 1)) == 0

    def kernel(x1_ref, x2_ref, o1_ref, o2_ref):
        lw = x1_ref.shape[-1]
        lane = jax.lax.broadcasted_iota(jnp.int32, (1, lw), 1)
        mask = ((lane & (p - 1)) == 0) if is_pow2 else ((lane % p) == 0)
        a = x1_ref[...]
        b = x2_ref[...]
        o1_ref[...] = jnp.where(mask, b, a)
        o2_ref[...] = jnp.where(mask, a, b)

    return kernel


def _flat_channel_kernel(p: int, C: int):
    """Lane-dense kernel for arbitrary C/p: channel = (global flat index) % C,
    exchange iff channel % p == 0.  Mask cost is VPU filler under the HBM bound."""
    is_pow2 = (p & (p - 1)) == 0

    def kernel(x1_ref, x2_ref, o1_ref, o2_ref):
        rows, lw = x1_ref.shape
        # Flat element offset of this block, reduced mod C (scalar, no overflow).
        blk_off = (pl.program_id(0) * ((rows * lw) % C)) % C
        lane_c = jax.lax.broadcasted_iota(jnp.int32, (1, lw), 1) % C
        row_c = (blk_off
                 + jax.lax.broadcasted_iota(jnp.int32, (rows, 1), 0) * (lw % C)) % C
        c = lane_c + row_c                      # in [0, 2C - 2]
        c = jnp.where(c >= C, c - C, c)         # cheap wrap instead of a full mod
        mask = ((c & (p - 1)) == 0) if is_pow2 else ((c % p) == 0)
        a = x1_ref[...]
        b = x2_ref[...]
        o1_ref[...] = jnp.where(mask, b, a)
        o2_ref[...] = jnp.where(mask, a, b)

    return kernel


def _channel_lane_kernel(p: int, C: int):
    """Last-resort kernel (channel on lanes), refs are (tile_rows, C)."""

    def kernel(x1_ref, x2_ref, o1_ref, o2_ref):
        c = jax.lax.broadcasted_iota(jnp.int32, (1, C), 1)
        mask = (c % p) == 0
        a = x1_ref[...]
        b = x2_ref[...]
        o1_ref[...] = jnp.where(mask, b, a)
        o2_ref[...] = jnp.where(mask, a, b)

    return kernel


# ----------------------------------------------------------------------------
# Tiling helpers
# ----------------------------------------------------------------------------
_TARGET_BLOCK_BYTES = 4 << 20  # ~4 MiB per ref per block (near HBM-roofline knee)


def _sublane_multiple(dtype) -> int:
    """Native sublane packing multiple: 8 (f32), 16 (bf16), 32 (int8/fp8)."""
    return max(8, 32 // jnp.dtype(dtype).itemsize)


def _pick_lane_width(total: int, multiple_of: int = 1):
    for lw in (2048, 1024, 512, 256, 128):
        if total % lw == 0 and lw % multiple_of == 0:
            return lw
    return None


def _pick_rows_per_block(R: int, row_bytes: int, sub: int) -> int:
    """Rows per block: ~_TARGET_BLOCK_BYTES per ref, sublane-aligned, >= 2 grid
    steps when possible (v7x has two TensorCores sharing the parallel grid),
    preferring an exact divisor of R so no step issues masked partial stores."""
    if R < 2 * sub:
        return R                                   # single full-array block
    target = max(sub, (_TARGET_BLOCK_BYTES // row_bytes) // sub * sub)
    limit = min(target, max(sub, (R // 2) // sub * sub))
    if R % sub == 0:
        t = limit
        while t >= sub and 2 * t >= limit:         # only accept "big enough" divisors
            if R % t == 0:
                return t
            t -= sub
    return limit


def _vmem_limit(block_bytes: int) -> int:
    # 4 refs x 2 pipeline buffers + headroom; stays under v7x's 64 MiB physical.
    return int(min(48 << 20, max(32 << 20, 10 * block_bytes)))


# ----------------------------------------------------------------------------
# Wrapper
# ----------------------------------------------------------------------------
@functools.partial(jax.jit, static_argnames=("p",))
def channel_exchange(x1, x2, p: int = 2):
    """x1, x2: (B, H, W, C). Returns (out1, out2), each of shape (B, C, H, W)."""
    assert x1.shape == x2.shape and x1.dtype == x2.dtype
    B, H, W, C = x1.shape
    L = H * W
    total = B * L * C
    itemsize = jnp.dtype(x1.dtype).itemsize
    sub = _sublane_multiple(x1.dtype)
    cost = pl.CostEstimate(
        flops=0, transcendentals=0, bytes_accessed=4 * total * itemsize
    )

    lane_mask_ok = (C % p == 0)
    lw = _pick_lane_width(total, p) if lane_mask_ok else None
    if lw is None:
        lane_mask_ok = False
        lw = _pick_lane_width(total)

    if lw is not None:
        # ---- Lane-dense flat layout (fast + generic paths) --------------------
        R = total // lw
        tr = _pick_rows_per_block(R, lw * itemsize, sub)
        grid = (pl.cdiv(R, tr),)
        spec = pl.BlockSpec((tr, lw), lambda i: (i, 0))
        out_sd = jax.ShapeDtypeStruct((R, lw), x1.dtype)
        block_bytes = tr * lw * itemsize
        kernel = _lane_mask_kernel(p) if lane_mask_ok else _flat_channel_kernel(p, C)

        o1, o2 = pl.pallas_call(
            kernel,
            out_shape=(out_sd, out_sd),
            grid=grid,
            in_specs=[spec, spec],
            out_specs=(spec, spec),
            compiler_params=pltpu.CompilerParams(
                dimension_semantics=("parallel",),
                vmem_limit_bytes=_vmem_limit(block_bytes),
            ),
            cost_estimate=cost,
        )(x1.reshape(R, lw), x2.reshape(R, lw))
    else:
        # ---- Last resort (total not a multiple of 128): channel on lanes ------
        R2 = B * L
        row_bytes = ((C + 127) // 128) * 128 * itemsize  # VMEM-padded row width
        tr = _pick_rows_per_block(R2, row_bytes, sub)
        grid = (pl.cdiv(R2, tr),)
        spec = pl.BlockSpec((tr, C), lambda i: (i, 0))
        out_sd = jax.ShapeDtypeStruct((R2, C), x1.dtype)
        block_bytes = tr * row_bytes

        o1, o2 = pl.pallas_call(
            _channel_lane_kernel(p, C),
            out_shape=(out_sd, out_sd),
            grid=grid,
            in_specs=[spec, spec],
            out_specs=(spec, spec),
            compiler_params=pltpu.CompilerParams(
                dimension_semantics=("parallel",),
                vmem_limit_bytes=_vmem_limit(block_bytes),
            ),
            cost_estimate=cost,
        )(x1.reshape(R2, C), x2.reshape(R2, C))

    # Glue: PyTorch's `permute(0,2,1).view(B,C,H,W)` tail is a flat-order
    # relabel of the contiguous (B, H*W, C)-ordered buffer (stride-preserving
    # zeros_like); reproduce with plain reshapes.
    return o1.reshape(B, C, H, W), o2.reshape(B, C, H, W)


# ----------------------------------------------------------------------------
# Pure-JAX reference (same semantics as the PyTorch module)
# ----------------------------------------------------------------------------
def _reference(x1, x2, p=2):
    B, H, W, C = x1.shape
    mask = (jnp.arange(C) % p) == 0
    m = mask[None, None, None, :]
    mixed1 = jnp.where(m, x2, x1)  # (B, H, W, C), memory order (b, l, c)
    mixed2 = jnp.where(m, x1, x2)
    return mixed1.reshape(B, C, H, W), mixed2.reshape(B, C, H, W)


if __name__ == "__main__":
    key = jax.random.PRNGKey(0)
    k = jax.random.split(key, 8)

    cases = []

    # 1) Fast lane-mask path (C % p == 0), f32, single block.
    cases.append((
        jax.random.normal(k[0], (2, 16, 16, 4), dtype=jnp.float32),
        jax.random.normal(k[1], (2, 16, 16, 4), dtype=jnp.float32), 2))

    # 2) Generic lane-dense path (C % p != 0), f32.
    cases.append((
        jax.random.normal(k[2], (2, 16, 16, 3), dtype=jnp.float32),
        jax.random.normal(k[3], (2, 16, 16, 3), dtype=jnp.float32), 2))

    # 3) Fast path, bf16 (sublane multiple 16), multi-step parallel grid.
    cases.append((
        jax.random.normal(k[4], (2, 64, 64, 32), dtype=jnp.bfloat16),
        jax.random.normal(k[5], (2, 64, 64, 32), dtype=jnp.bfloat16), 2))

    # 4) Last-resort path (total not a multiple of 128), tiny odd shape.
    cases.append((
        jax.random.normal(k[6], (1, 5, 5, 3), dtype=jnp.float32),
        jax.random.normal(k[7], (1, 5, 5, 3), dtype=jnp.float32), 2))

    for a, b, p in cases:
        o1, o2 = channel_exchange(a, b, p=p)
        jax.block_until_ready((o1, o2))
        r1, r2 = _reference(a, b, p=p)
        B, H, W, C = a.shape
        assert o1.shape == (B, C, H, W) and o2.shape == (B, C, H, W)
        assert bool(jnp.array_equal(o1, r1)), f"out1 mismatch for shape {a.shape}"
        assert bool(jnp.array_equal(o2, r2)), f"out2 mismatch for shape {a.shape}"

    print("KERNEL_OK")
</pallas_src>

<mosaic_0001>
module attributes {stable_mosaic.version = 11 : i64} {
  func.func @kernel(%arg0: i32, %arg1: memref<1x2048xf32, #tpu.memory_space<vmem>>, %arg2: memref<1x2048xf32, #tpu.memory_space<vmem>>, %arg3: memref<1x2048xf32, #tpu.memory_space<vmem>>, %arg4: memref<1x2048xf32, #tpu.memory_space<vmem>>) attributes {dimension_semantics = [#tpu.dimension_semantics<parallel>], iteration_bounds = array<i64: 1>, scalar_prefetch = 0 : i64, scratch_operands = 0 : i64, tpu.core_type = #tpu.core_type<tc>, window_params = [{transform_indices = @transform_0, window_bounds = array<i64: 1, 2048>}, {transform_indices = @transform_1, window_bounds = array<i64: 1, 2048>}, {transform_indices = @transform_2, window_bounds = array<i64: 1, 2048>}, {transform_indices = @transform_3, window_bounds = array<i64: 1, 2048>}]} {
    %0 = tpu.iota {dimensions = array<i32: 1>} : vector<1x2048xi32>
    %c1_i32 = arith.constant 1 : i32
    %1 = vector.broadcast %c1_i32 : i32 to vector<1x2048xi32>
    %2 = arith.andi %0, %1 : vector<1x2048xi32>
    %c0_i32 = arith.constant 0 : i32
    %3 = vector.broadcast %c0_i32 : i32 to vector<1x2048xi32>
    %4 = arith.cmpi eq, %2, %3 : vector<1x2048xi32>
    %c0 = arith.constant 0 : index
    %c0_0 = arith.constant 0 : index
    %5 = vector.load %arg1[%c0, %c0_0] : memref<1x2048xf32, #tpu.memory_space<vmem>>, vector<1x2048xf32>
    %c0_1 = arith.constant 0 : index
    %c0_2 = arith.constant 0 : index
    %6 = vector.load %arg2[%c0_1, %c0_2] : memref<1x2048xf32, #tpu.memory_space<vmem>>, vector<1x2048xf32>
    %7 = arith.select %4, %6, %5 : vector<1x2048xi1>, vector<1x2048xf32>
    %c0_3 = arith.constant 0 : index
    %c0_4 = arith.constant 0 : index
    %8 = vector.load %arg3[%c0_3, %c0_4] : memref<1x2048xf32, #tpu.memory_space<vmem>>, vector<1x2048xf32>
    tpu.vector_store %arg3[%c0_3, %c0_4], %7 {strides = array<i32>} : memref<1x2048xf32, #tpu.memory_space<vmem>>, vector<1x2048xf32>,
    %9 = arith.select %4, %5, %6 : vector<1x2048xi1>, vector<1x2048xf32>
    %c0_5 = arith.constant 0 : index
    %c0_6 = arith.constant 0 : index
    %10 = vector.load %arg4[%c0_5, %c0_6] : memref<1x2048xf32, #tpu.memory_space<vmem>>, vector<1x2048xf32>
    tpu.vector_store %arg4[%c0_5, %c0_6], %9 {strides = array<i32>} : memref<1x2048xf32, #tpu.memory_space<vmem>>, vector<1x2048xf32>,
    return
  }
  func.func @transform_0(%arg0: i32) -> (i32, i32) {
    %c0_i32 = arith.constant 0 : i32
    %c0_i32_0 = arith.constant 0 : i32
    return %arg0, %c0_i32 : i32, i32
  }
  func.func @transform_1(%arg0: i32) -> (i32, i32) {
    %c0_i32 = arith.constant 0 : i32
    %c0_i32_0 = arith.constant 0 : i32
    return %arg0, %c0_i32 : i32, i32
  }
  func.func @transform_2(%arg0: i32) -> (i32, i32) {
    %c0_i32 = arith.constant 0 : i32
    %c0_i32_0 = arith.constant 0 : i32
    return %arg0, %c0_i32 : i32, i32
  }
  func.func @transform_3(%arg0: i32) -> (i32, i32) {
    %c0_i32 = arith.constant 0 : i32
    %c0_i32_0 = arith.constant 0 : i32
    return %arg0, %c0_i32 : i32, i32
  }
}

</mosaic_0001>

<llo_original>
// kernel: channel_exchange.1
$region0: #{channel_exchange.1}
  #allocation0 [shape = 'u32[]', space=smem, size = 0x4, offset = 0x4, fixed_abs, tag = 'smem constant byte address 0x4 - core index']
  #allocation1 [shape = 'u32[144,128]{1,0:T(1,128)}', space=vmem, size = 0x12000, scoped, tag = 'internal scratch']
  %s0 = inlined_call_operand.vmem [shape: f32[1,2048], index: 0, kind: input, shape index: {}]
  %s1 = inlined_call_operand.vmem [shape: f32[1,2048], index: 1, kind: input, shape index: {}]
  %s2 = inlined_call_operand.vmem [shape: f32[1,2048], index: 2, kind: output, shape index: {0}]
  %s3 = inlined_call_operand.vmem [shape: f32[1,2048], index: 3, kind: output, shape index: {1}]
  %4 = xla_tuple %s2, %s3
  %s5 = sld [smem:[#allocation0]]
  $region26: #{channel_exchange.1} parent=0
    _
  %s7 = ssub.s32 1, %s5
  %s8 = scalar_select 0, %s7, %s5
  // Predicated region
  $region2: #{channel_exchange.1} parent=0 // pred_check
    _
  $region3: #{channel_exchange.1} parent=0 // pred_check_branch
    %10 = sbr.rel (0) target = $region5
  $region4: #{channel_exchange.1} parent=0 // pred_region
    _
  $region5: #{channel_exchange.1} parent=0 // pred_fallthru
    _
  // Predicated region
  $region6: #{channel_exchange.1} parent=0 // pred_check
    _
  $region7: #{channel_exchange.1} parent=0 // pred_check_branch
    %12 = sbr.rel (0) target = $region9
  $region8: #{channel_exchange.1} parent=0 // pred_region
    _
  $region9: #{channel_exchange.1} parent=0 // pred_fallthru
    _
  %v13 = vlaneseq
  %v14 = vand.u32 %v13, 127
  %v15 = vadd.s32 %v14, 128
  %v16 = vadd.s32 %v14, 256
  %v17 = vadd.s32 %v14, 384
  %v18 = vadd.s32 %v14, 512
  %v19 = vadd.s32 %v14, 640
  %v20 = vadd.s32 %v14, 768
  %v21 = vadd.s32 %v14, 896
  %v22 = vadd.s32 %v14, 1024
  %v23 = vadd.s32 %v14, 1152
  %v24 = vadd.s32 %v14, 1280
  %v25 = vadd.s32 %v14, 1408
  %v26 = vadd.s32 %v14, 1536
  %v27 = vadd.s32 %v14, 1664
  %v28 = vadd.s32 %v14, 1792
  %v29 = vadd.s32 %v14, 1920
  %v30 = vand.u32 %v14, 1
  %v31 = vand.u32 %v15, 1
  %v32 = vand.u32 %v16, 1
  %v33 = vand.u32 %v17, 1
  %v34 = vand.u32 %v18, 1
  %v35 = vand.u32 %v19, 1
  %v36 = vand.u32 %v20, 1
  %v37 = vand.u32 %v21, 1
  %v38 = vand.u32 %v22, 1
  %v39 = vand.u32 %v23, 1
  %v40 = vand.u32 %v24, 1
  %v41 = vand.u32 %v25, 1
  %v42 = vand.u32 %v26, 1
  %v43 = vand.u32 %v27, 1
  %v44 = vand.u32 %v28, 1
  %v45 = vand.u32 %v29, 1
  %vm46 = vcmp.eq.s32.totalorder %v30, 0
  %vm47 = vcmp.eq.s32.totalorder %v31, 0
  %vm48 = vcmp.eq.s32.totalorder %v32, 0
  %vm49 = vcmp.eq.s32.totalorder %v33, 0
  %vm50 = vcmp.eq.s32.totalorder %v34, 0
  %vm51 = vcmp.eq.s32.totalorder %v35, 0
  %vm52 = vcmp.eq.s32.totalorder %v36, 0
  %vm53 = vcmp.eq.s32.totalorder %v37, 0
  %vm54 = vcmp.eq.s32.totalorder %v38, 0
  %vm55 = vcmp.eq.s32.totalorder %v39, 0
  %vm56 = vcmp.eq.s32.totalorder %v40, 0
  %vm57 = vcmp.eq.s32.totalorder %v41, 0
  %vm58 = vcmp.eq.s32.totalorder %v42, 0
  %vm59 = vcmp.eq.s32.totalorder %v43, 0
  %vm60 = vcmp.eq.s32.totalorder %v44, 0
  %vm61 = vcmp.eq.s32.totalorder %v45, 0
  %v62 = vld [vmem:[%s0] sm:$0xff]
  %v63 = vld [vmem:[%s0 + $0x8] sm:$0xff]
  %v64 = vld [vmem:[%s1] sm:$0xff]
  %v65 = vld [vmem:[%s1 + $0x8] sm:$0xff]
  %v68 = vlaneseq
  %v69 = vshrl.u32 %v68, 7
  %v70 = vsub.s32 0, %v69
  %v71 = vrot.slane %v64, %v70
  %v72 = vlaneseq
  %v73 = vshrl.u32 %v72, 7
  %v74 = vsub.s32 1, %v73
  %v75 = vrot.slane %v64, %v74
  %v76 = vlaneseq
  %v77 = vshrl.u32 %v76, 7
  %v78 = vsub.s32 2, %v77
  %v79 = vrot.slane %v64, %v78
  %v80 = vlaneseq
  %v81 = vshrl.u32 %v80, 7
  %v82 = vsub.s32 3, %v81
  %v83 = vrot.slane %v64, %v82
  %v84 = vlaneseq
  %v85 = vshrl.u32 %v84, 7
  %v86 = vsub.s32 4, %v85
  %v87 = vrot.slane %v64, %v86
  %v88 = vlaneseq
  %v89 = vshrl.u32 %v88, 7
  %v90 = vsub.s32 5, %v89
  %v91 = vrot.slane %v64, %v90
  %v92 = vlaneseq
  %v93 = vshrl.u32 %v92, 7
  %v94 = vsub.s32 6, %v93
  %v95 = vrot.slane %v64, %v94
  %v96 = vlaneseq
  %v97 = vshrl.u32 %v96, 7
  %v98 = vsub.s32 7, %v97
  %v99 = vrot.slane %v64, %v98
  %v100 = vlaneseq
  %v101 = vshrl.u32 %v100, 7
  %v102 = vsub.s32 0, %v101
  %v103 = vrot.slane %v65, %v102
  %v104 = vlaneseq
  %v105 = vshrl.u32 %v104, 7
  %v106 = vsub.s32 1, %v105
  %v107 = vrot.slane %v65, %v106
  %v108 = vlaneseq
  %v109 = vshrl.u32 %v108, 7
  %v110 = vsub.s32 2, %v109
  %v111 = vrot.slane %v65, %v110
  %v112 = vlaneseq
  %v113 = vshrl.u32 %v112, 7
  %v114 = vsub.s32 3, %v113
  %v115 = vrot.slane %v65, %v114
  %v116 = vlaneseq
  %v117 = vshrl.u32 %v116, 7
  %v118 = vsub.s32 4, %v117
  %v119 = vrot.slane %v65, %v118
  %v120 = vlaneseq
  %v121 = vshrl.u32 %v120, 7
  %v122 = vsub.s32 5, %v121
  %v123 = vrot.slane %v65, %v122
  %v124 = vlaneseq
  %v125 = vshrl.u32 %v124, 7
  %v126 = vsub.s32 6, %v125
  %v127 = vrot.slane %v65, %v126
  %v128 = vlaneseq
  %v129 = vshrl.u32 %v128, 7
  %v130 = vsub.s32 7, %v129
  %v131 = vrot.slane %v65, %v130
  %v150 = vlaneseq
  %v151 = vshrl.u32 %v150, 7
  %v152 = vsub.s32 0, %v151
  %v153 = vrot.slane %v62, %v152
  %v154 = vlaneseq
  %v155 = vshrl.u32 %v154, 7
  %v156 = vsub.s32 1, %v155
  %v157 = vrot.slane %v62, %v156
  %v158 = vlaneseq
  %v159 = vshrl.u32 %v158, 7
  %v160 = vsub.s32 2, %v159
  %v161 = vrot.slane %v62, %v160
  %v162 = vlaneseq
  %v163 = vshrl.u32 %v162, 7
  %v164 = vsub.s32 3, %v163
  %v165 = vrot.slane %v62, %v164
  %v166 = vlaneseq
  %v167 = vshrl.u32 %v166, 7
  %v168 = vsub.s32 4, %v167
  %v169 = vrot.slane %v62, %v168
  %v170 = vlaneseq
  %v171 = vshrl.u32 %v170, 7
  %v172 = vsub.s32 5, %v171
  %v173 = vrot.slane %v62, %v172
  %v174 = vlaneseq
  %v175 = vshrl.u32 %v174, 7
  %v176 = vsub.s32 6, %v175
  %v177 = vrot.slane %v62, %v176
  %v178 = vlaneseq
  %v179 = vshrl.u32 %v178, 7
  %v180 = vsub.s32 7, %v179
  %v181 = vrot.slane %v62, %v180
  %v182 = vlaneseq
  %v183 = vshrl.u32 %v182, 7
  %v184 = vsub.s32 0, %v183
  %v185 = vrot.slane %v63, %v184
  %v186 = vlaneseq
  %v187 = vshrl.u32 %v186, 7
  %v188 = vsub.s32 1, %v187
  %v189 = vrot.slane %v63, %v188
  %v190 = vlaneseq
  %v191 = vshrl.u32 %v190, 7
  %v192 = vsub.s32 2, %v191
  %v193 = vrot.slane %v63, %v192
  %v194 = vlaneseq
  %v195 = vshrl.u32 %v194, 7
  %v196 = vsub.s32 3, %v195
  %v197 = vrot.slane %v63, %v196
  %v198 = vlaneseq
  %v199 = vshrl.u32 %v198, 7
  %v200 = vsub.s32 4, %v199
  %v201 = vrot.slane %v63, %v200
  %v202 = vlaneseq
  %v203 = vshrl.u32 %v202, 7
  %v204 = vsub.s32 5, %v203
  %v205 = vrot.slane %v63, %v204
  %v206 = vlaneseq
  %v207 = vshrl.u32 %v206, 7
  %v208 = vsub.s32 6, %v207
  %v209 = vrot.slane %v63, %v208
  %v210 = vlaneseq
  %v211 = vshrl.u32 %v210, 7
  %v212 = vsub.s32 7, %v211
  %v213 = vrot.slane %v63, %v212
  %v230 = vsel %vm46, %v71, %v153
  %v231 = vsel %vm47, %v75, %v157
  %v232 = vsel %vm48, %v79, %v161
  %v233 = vsel %vm49, %v83, %v165
  %v234 = vsel %vm50, %v87, %v169
  %v235 = vsel %vm51, %v91, %v173
  %v236 = vsel %vm52, %v95, %v177
  %v237 = vsel %vm53, %v99, %v181
  %v238 = vsel %vm54, %v103, %v185
  %v239 = vsel %vm55, %v107, %v189
  %v240 = vsel %vm56, %v111, %v193
  %v241 = vsel %vm57, %v115, %v197
  %v242 = vsel %vm58, %v119, %v201
  %v243 = vsel %vm59, %v123, %v205
  %v244 = vsel %vm60, %v127, %v209
  %v245 = vsel %vm61, %v131, %v213
  %v262 = vcombine.low %v230, %v231
  %v263 = vcombine.low %v232, %v233
  %v264 = vcombine.low %v234, %v235
  %v265 = vcombine.low %v236, %v237
  %v267 = vunpack.c.l.s4 1966171168
  %v268 = vunpack.c.0.s8 %v267
  %v269 = vlaneseq
  %v270 = vshrl.u32 %v269, 7
  %v271 = vsub.s32 %v268, %v270
  %v272 = vrot.slane %v262, %v271
  %v274 = vunpack.c.l.s4 1966171168
  %v275 = vunpack.c.0.s8 %v274
  %v276 = vlaneseq
  %v277 = vshrl.u32 %v276, 7
  %v278 = vsub.s32 %v275, %v277
  %v279 = vrot.slane %v263, %v278
  %v281 = vunpack.c.l.s4 1966171168
  %v282 = vunpack.c.0.s8 %v281
  %v283 = vlaneseq
  %v284 = vshrl.u32 %v283, 7
  %v285 = vsub.s32 %v282, %v284
  %v286 = vrot.slane %v264, %v285
  %v288 = vunpack.c.l.s4 1966171168
  %v289 = vunpack.c.0.s8 %v288
  %v290 = vlaneseq
  %v291 = vshrl.u32 %v290, 7
  %v292 = vsub.s32 %v289, %v291
  %v293 = vrot.slane %v265, %v292
  %v294 = vcombine.low %v272, %v279
  %v295 = vcombine.low %v286, %v293
  %v297 = vunpack.c.l.s4 1966171168
  %v298 = vunpack.c.0.s8 %v297
  %v299 = vlaneseq
  %v300 = vshrl.u32 %v299, 7
  %v301 = vsub.s32 %v298, %v300
  %v302 = vrot.slane %v294, %v301
  %v304 = vunpack.c.l.s4 1966171168
  %v305 = vunpack.c.0.s8 %v304
  %v306 = vlaneseq
  %v307 = vshrl.u32 %v306, 7
  %v308 = vsub.s32 %v305, %v307
  %v309 = vrot.slane %v295, %v308
  %v310 = vcombine.low %v302, %v309
  %v311 = vcombine.low %v238, %v239
  %v312 = vcombine.low %v240, %v241
  %v313 = vcombine.low %v242, %v243
  %v314 = vcombine.low %v244, %v245
  %v316 = vunpack.c.l.s4 1966171168
  %v317 = vunpack.c.0.s8 %v316
  %v318 = vlaneseq
  %v319 = vshrl.u32 %v318, 7
  %v320 = vsub.s32 %v317, %v319
  %v321 = vrot.slane %v311, %v320
  %v323 = vunpack.c.l.s4 1966171168
  %v324 = vunpack.c.0.s8 %v323
  %v325 = vlaneseq
  %v326 = vshrl.u32 %v325, 7
  %v327 = vsub.s32 %v324, %v326
  %v328 = vrot.slane %v312, %v327
  %v330 = vunpack.c.l.s4 1966171168
  %v331 = vunpack.c.0.s8 %v330
  %v332 = vlaneseq
  %v333 = vshrl.u32 %v332, 7
  %v334 = vsub.s32 %v331, %v333
  %v335 = vrot.slane %v313, %v334
  %v337 = vunpack.c.l.s4 1966171168
  %v338 = vunpack.c.0.s8 %v337
  %v339 = vlaneseq
  %v340 = vshrl.u32 %v339, 7
  %v341 = vsub.s32 %v338, %v340
  %v342 = vrot.slane %v314, %v341
  %v343 = vcombine.low %v321, %v328
  %v344 = vcombine.low %v335, %v342
  %v346 = vunpack.c.l.s4 1966171168
  %v347 = vunpack.c.0.s8 %v346
  %v348 = vlaneseq
  %v349 = vshrl.u32 %v348, 7
  %v350 = vsub.s32 %v347, %v349
  %v351 = vrot.slane %v343, %v350
  %v353 = vunpack.c.l.s4 1966171168
  %v354 = vunpack.c.0.s8 %v353
  %v355 = vlaneseq
  %v356 = vshrl.u32 %v355, 7
  %v357 = vsub.s32 %v354, %v356
  %v358 = vrot.slane %v344, %v357
  %v359 = vcombine.low %v351, %v358
  %362 = vst [vmem:[%s2] sm:$0xff] %v310
  %363 = vst [vmem:[%s2 + $0x8] sm:$0xff] %v359
  %v364 = vsel %vm46, %v153, %v71
  %v365 = vsel %vm47, %v157, %v75
  %v366 = vsel %vm48, %v161, %v79
  %v367 = vsel %vm49, %v165, %v83
  %v368 = vsel %vm50, %v169, %v87
  %v369 = vsel %vm51, %v173, %v91
  %v370 = vsel %vm52, %v177, %v95
  %v371 = vsel %vm53, %v181, %v99
  %v372 = vsel %vm54, %v185, %v103
  %v373 = vsel %vm55, %v189, %v107
  %v374 = vsel %vm56, %v193, %v111
  %v375 = vsel %vm57, %v197, %v115
  %v376 = vsel %vm58, %v201, %v119
  %v377 = vsel %vm59, %v205, %v123
  %v378 = vsel %vm60, %v209, %v127
  %v379 = vsel %vm61, %v213, %v131
  %v396 = vcombine.low %v364, %v365
  %v397 = vcombine.low %v366, %v367
  %v398 = vcombine.low %v368, %v369
  %v399 = vcombine.low %v370, %v371
  %v401 = vunpack.c.l.s4 1966171168
  %v402 = vunpack.c.0.s8 %v401
  %v403 = vlaneseq
  %v404 = vshrl.u32 %v403, 7
  %v405 = vsub.s32 %v402, %v404
  %v406 = vrot.slane %v396, %v405
  %v408 = vunpack.c.l.s4 1966171168
  %v409 = vunpack.c.0.s8 %v408
  %v410 = vlaneseq
  %v411 = vshrl.u32 %v410, 7
  %v412 = vsub.s32 %v409, %v411
  %v413 = vrot.slane %v397, %v412
  %v415 = vunpack.c.l.s4 1966171168
  %v416 = vunpack.c.0.s8 %v415
  %v417 = vlaneseq
  %v418 = vshrl.u32 %v417, 7
  %v419 = vsub.s32 %v416, %v418
  %v420 = vrot.slane %v398, %v419
  %v422 = vunpack.c.l.s4 1966171168
  %v423 = vunpack.c.0.s8 %v422
  %v424 = vlaneseq
  %v425 = vshrl.u32 %v424, 7
  %v426 = vsub.s32 %v423, %v425
  %v427 = vrot.slane %v399, %v426
  %v428 = vcombine.low %v406, %v413
  %v429 = vcombine.low %v420, %v427
  %v431 = vunpack.c.l.s4 1966171168
  %v432 = vunpack.c.0.s8 %v431
  %v433 = vlaneseq
  %v434 = vshrl.u32 %v433, 7
  %v435 = vsub.s32 %v432, %v434
  %v436 = vrot.slane %v428, %v435
  %v438 = vunpack.c.l.s4 1966171168
  %v439 = vunpack.c.0.s8 %v438
  %v440 = vlaneseq
  %v441 = vshrl.u32 %v440, 7
  %v442 = vsub.s32 %v439, %v441
  %v443 = vrot.slane %v429, %v442
  %v444 = vcombine.low %v436, %v443
  %v445 = vcombine.low %v372, %v373
  %v446 = vcombine.low %v374, %v375
  %v447 = vcombine.low %v376, %v377
  %v448 = vcombine.low %v378, %v379
  %v450 = vunpack.c.l.s4 1966171168
  %v451 = vunpack.c.0.s8 %v450
  %v452 = vlaneseq
  %v453 = vshrl.u32 %v452, 7
  %v454 = vsub.s32 %v451, %v453
  %v455 = vrot.slane %v445, %v454
  %v457 = vunpack.c.l.s4 1966171168
  %v458 = vunpack.c.0.s8 %v457
  %v459 = vlaneseq
  %v460 = vshrl.u32 %v459, 7
  %v461 = vsub.s32 %v458, %v460
  %v462 = vrot.slane %v446, %v461
  %v464 = vunpack.c.l.s4 1966171168
  %v465 = vunpack.c.0.s8 %v464
  %v466 = vlaneseq
  %v467 = vshrl.u32 %v466, 7
  %v468 = vsub.s32 %v465, %v467
  %v469 = vrot.slane %v447, %v468
  %v471 = vunpack.c.l.s4 1966171168
  %v472 = vunpack.c.0.s8 %v471
  %v473 = vlaneseq
  %v474 = vshrl.u32 %v473, 7
  %v475 = vsub.s32 %v472, %v474
  %v476 = vrot.slane %v448, %v475
  %v477 = vcombine.low %v455, %v462
  %v478 = vcombine.low %v469, %v476
  %v480 = vunpack.c.l.s4 1966171168
  %v481 = vunpack.c.0.s8 %v480
  %v482 = vlaneseq
  %v483 = vshrl.u32 %v482, 7
  %v484 = vsub.s32 %v481, %v483
  %v485 = vrot.slane %v477, %v484
  %v487 = vunpack.c.l.s4 1966171168
  %v488 = vunpack.c.0.s8 %v487
  %v489 = vlaneseq
  %v490 = vshrl.u32 %v489, 7
  %v491 = vsub.s32 %v488, %v490
  %v492 = vrot.slane %v478, %v491
  %v493 = vcombine.low %v485, %v492
  %496 = vst [vmem:[%s3] sm:$0xff] %v444
  %497 = vst [vmem:[%s3 + $0x8] sm:$0xff] %v493
  // Predicated region
  $region10: #{channel_exchange.1} parent=0 // pred_check
    _
  $region11: #{channel_exchange.1} parent=0 // pred_check_branch
    %499 = sbr.rel (0) target = $region13
  $region12: #{channel_exchange.1} parent=0 // pred_region
    _
  $region13: #{channel_exchange.1} parent=0 // pred_fallthru
    _
  // Predicated region
  $region14: #{channel_exchange.1} parent=0 // pred_check
    _
  $region15: #{channel_exchange.1} parent=0 // pred_check_branch
    %501 = sbr.rel (0) target = $region17
  $region16: #{channel_exchange.1} parent=0 // pred_region
    _
  $region17: #{channel_exchange.1} parent=0 // pred_fallthru
    _
  // Predicated region
  $region18: #{channel_exchange.1} parent=0 // pred_check
    _
  $region19: #{channel_exchange.1} parent=0 // pred_check_branch
    %503 = sbr.rel (0) target = $region21
  $region20: #{channel_exchange.1} parent=0 // pred_region
    _
  $region21: #{channel_exchange.1} parent=0 // pred_fallthru
    _
  // Predicated region
  $region22: #{channel_exchange.1} parent=0 // pred_check
    _
  $region23: #{channel_exchange.1} parent=0 // pred_check_branch
    %505 = sbr.rel (0) target = $region25
  $region24: #{channel_exchange.1} parent=0 // pred_region
    _
  $region25: #{channel_exchange.1} parent=0 // pred_fallthru
    _

</llo_original>
